<compile_context>
chip_gen: v7x
topology: tpu7x:2x2x1
jax: 0.10.0
libtpu: 0.0.40
codegen_flags: <defaults>
</compile_context>

<pallas_src>
import jax
import jax.numpy as jnp
from jax import lax
from jax.experimental import pallas as pl
from jax.experimental.pallas import tpu as pltpu


def _dag_kernel(x_ref, w_ref, o_ref):
    # out_tile = x_tile @ W_total^T : contract the last dims of both operands
    # so the PyTorch (out, in) weight layout hits the MXU's transposed-RHS
    # path without materializing a transposed copy in VMEM.
    o_ref[...] = lax.dot_general(
        x_ref[...],
        w_ref[...],
        dimension_numbers=(((1,), (1,)), ((), ())),
        preferred_element_type=jnp.float32,
    ).astype(o_ref.dtype)


def _round_up(x, m):
    return ((x + m - 1) // m) * m


def _fold_weights(weights):
    """W_total = W_{n-1} @ ... @ W_0  (shape (d_out, d_in)); done once, tiny."""
    w_total = weights[0]
    for w in weights[1:]:
        w_total = jnp.dot(w, w_total, preferred_element_type=jnp.float32)
    return w_total


def _choose_batch_tile(b, tile_b):
    # Keep >= 2 grid steps whenever the batch allows, so the "parallel" axis
    # shards across both v7x TensorCores; keep the tile a multiple of 8 for
    # the (8, 128) sublane constraint (or use the full batch as one block).
    if b < 16:
        return b
    return min(tile_b, _round_up(pl.cdiv(b, 2), 8))


def dag_forward(x, weights, *, tile_b=1024):
    """Fused forward pass of the DAG module (chain of bias-free Linears).

    x:       (B, layers_list[0]) float32
    weights: list of (layers_list[i+1], layers_list[i]) float32 arrays
             (PyTorch nn.Linear layout, bias-free)
    returns: (B, layers_list[-1]) float32
    """
    b, d_in = x.shape
    d_out = int(weights[-1].shape[0])

    # Fold the whole chain into one effective weight (exact algebra; only f32
    # reassociation rounding differs from layer-by-layer evaluation).
    w_total = _fold_weights(list(weights))

    # Only pad out_features when it is wide enough that unmasked 128-lane
    # stores beat the write amplification + extra slice pass.  Tiny d_out
    # (e.g. 16) stays unpadded: a masked vst is cheaper than 8x padded HBM
    # writes plus a separate XLA slice pass.
    if d_out >= 64 and d_out % 128 != 0:
        d_out_eff = _round_up(d_out, 128)
        w_total = (
            jnp.zeros((d_out_eff, d_in), w_total.dtype).at[:d_out, :].set(w_total)
        )
    else:
        d_out_eff = d_out

    tb = _choose_batch_tile(b, tile_b)
    grid = (pl.cdiv(b, tb),)

    in_specs = [
        pl.BlockSpec((tb, d_in), lambda i: (i, 0)),          # batch-tiled x
        pl.BlockSpec((d_out_eff, d_in), lambda i: (0, 0)),   # VMEM-resident W
    ]
    out_specs = pl.BlockSpec((tb, d_out_eff), lambda i: (i, 0))

    # Advisory scheduler hints: folded-chain FLOPs / bytes.
    flops = 2 * b * d_in * d_out_eff
    bytes_accessed = (b * d_in + d_out_eff * d_in + b * d_out_eff) * 4
    cost = pl.CostEstimate(
        flops=flops, transcendentals=0, bytes_accessed=bytes_accessed
    )

    # Exact double-buffered VMEM footprint x2 headroom, capped below v7x's
    # 64 MiB physical VMEM so pipelining depth is never squeezed.
    footprint = (
        2 * tb * d_in * 4            # double-buffered x tiles
        + 2 * tb * d_out_eff * 4     # double-buffered out tiles
        + 2 * d_out_eff * d_in * 4   # weight buffers (constant index, tiny)
    )
    vmem_limit = int(min(max(2 * footprint, 4 << 20), 48 << 20))

    out = pl.pallas_call(
        _dag_kernel,
        out_shape=jax.ShapeDtypeStruct((b, d_out_eff), jnp.float32),
        grid=grid,
        in_specs=in_specs,
        out_specs=out_specs,
        compiler_params=pltpu.CompilerParams(
            dimension_semantics=("parallel",),
            vmem_limit_bytes=vmem_limit,
        ),
        cost_estimate=cost,
    )(x, w_total)

    return out[:, :d_out] if d_out_eff != d_out else out


def dag_forward_ref(x, weights):
    h = x
    for w in weights:
        h = h @ w.T
    return h


def _make_inputs(layers_list, batch, key):
    keys = jax.random.split(key, len(layers_list))
    x = jax.random.normal(keys[0], (batch, layers_list[0]), dtype=jnp.float32)
    weights = []
    for i in range(len(layers_list) - 1):
        fan_in = layers_list[i]
        bound = 1.0 / jnp.sqrt(jnp.float32(fan_in))
        w = jax.random.uniform(
            keys[i + 1],
            (layers_list[i + 1], layers_list[i]),
            dtype=jnp.float32,
            minval=-bound,
            maxval=bound,
        )
        weights.append(w)
    return x, weights


if __name__ == "__main__":
    # Mirrors DAG([32, 64, 48, 16]) with batch=8 (test_dehghannasiri scale).
    layers_list = [32, 64, 48, 16]

    # Small batch: single grid step.
    x, weights = _make_inputs(layers_list, 8, jax.random.PRNGKey(0))
    out = jax.block_until_ready(dag_forward(x, weights))
    ref = dag_forward_ref(x, weights)
    assert out.shape == (8, layers_list[-1])
    assert jnp.allclose(out, ref, atol=1e-4, rtol=1e-4), "mismatch (batch=8)"

    # Larger batch: exercises the batch-tiled / 2-step parallel grid path.
    xb, wb = _make_inputs(layers_list, 512, jax.random.PRNGKey(1))
    outb = jax.block_until_ready(dag_forward(xb, wb))
    refb = dag_forward_ref(xb, wb)
    assert outb.shape == (512, layers_list[-1])
    assert jnp.allclose(outb, refb, atol=1e-4, rtol=1e-4), "mismatch (batch=512)"

    print("KERNEL_OK")
</pallas_src>

<mosaic_0001>
module attributes {stable_mosaic.version = 11 : i64} {
  func.func @_dag_kernel(%arg0: i32, %arg1: memref<8x32xf32, #tpu.memory_space<vmem>>, %arg2: memref<16x32xf32, #tpu.memory_space<vmem>>, %arg3: memref<8x16xf32, #tpu.memory_space<vmem>>) attributes {dimension_semantics = [#tpu.dimension_semantics<parallel>], iteration_bounds = array<i64: 1>, scalar_prefetch = 0 : i64, scratch_operands = 0 : i64, tpu.core_type = #tpu.core_type<tc>, window_params = [{transform_indices = @transform_0, window_bounds = array<i64: 8, 32>}, {pipeline_mode = #tpu.pipeline_mode<synchronous>, transform_indices = @transform_1, window_bounds = array<i64: 16, 32>}, {transform_indices = @transform_2, window_bounds = array<i64: 8, 16>}]} {
    %c0 = arith.constant 0 : index
    %c0_0 = arith.constant 0 : index
    %0 = vector.load %arg1[%c0, %c0_0] : memref<8x32xf32, #tpu.memory_space<vmem>>, vector<8x32xf32>
    %c0_1 = arith.constant 0 : index
    %c0_2 = arith.constant 0 : index
    %1 = vector.load %arg2[%c0_1, %c0_2] : memref<16x32xf32, #tpu.memory_space<vmem>>, vector<16x32xf32>
    %cst = arith.constant dense<0.000000e+00> : vector<8x16xf32>
    %2 = tpu.matmul %0, %1, %cst {dimension_numbers = #tpu.dot_dimension_numbers<[1], [1], [0], [0], [0, 0, 1, 0], [], []>} : vector<8x32xf32>, vector<16x32xf32>, vector<8x16xf32> -> vector<8x16xf32>
    %c0_3 = arith.constant 0 : index
    %c0_4 = arith.constant 0 : index
    %3 = vector.load %arg3[%c0_3, %c0_4] : memref<8x16xf32, #tpu.memory_space<vmem>>, vector<8x16xf32>
    tpu.vector_store %arg3[%c0_3, %c0_4], %2 {strides = array<i32>} : memref<8x16xf32, #tpu.memory_space<vmem>>, vector<8x16xf32>,
    return
  }
  func.func @transform_0(%arg0: i32) -> (i32, i32) {
    %c0_i32 = arith.constant 0 : i32
    %c0_i32_0 = arith.constant 0 : i32
    return %arg0, %c0_i32 : i32, i32
  }
  func.func @transform_1(%arg0: i32) -> (i32, i32) {
    %c0_i32 = arith.constant 0 : i32
    %c0_i32_0 = arith.constant 0 : i32
    %c0_i32_1 = arith.constant 0 : i32
    return %c0_i32, %c0_i32_0 : i32, i32
  }
  func.func @transform_2(%arg0: i32) -> (i32, i32) {
    %c0_i32 = arith.constant 0 : i32
    %c0_i32_0 = arith.constant 0 : i32
    return %arg0, %c0_i32 : i32, i32
  }
}

</mosaic_0001>

<llo_original>
// kernel: tpu_custom_call.1
$region0: #{tpu_custom_call.1}
  #allocation0 [shape = 'u32[]', space=smem, size = 0x4, offset = 0x4, fixed_abs, tag = 'smem constant byte address 0x4 - core index']
  #allocation1 [shape = 'u32[144,128]{1,0:T(1,128)}', space=vmem, size = 0x12000, scoped, tag = 'internal scratch']
  %s0 = inlined_call_operand.hbm [shape: f32[8,32], index: 0, kind: input, shape index: {}]
  %s1 = inlined_call_operand.hbm [shape: f32[16,32], index: 1, kind: input, shape index: {}]
  %s2 = inlined_call_operand.hbm [shape: f32[8,16], index: 2, kind: output, shape index: {}]
  %s3 = sld [smem:[#allocation0]]
  $region26: #{tpu_custom_call.1} parent=0
    _
  %s5 = ssub.s32 1, %s3
  %s6 = scalar_select 0, %s5, %s3
  $region1: #{tpu_custom_call.1} parent=0
    #allocation2 [shape = 'u8[4096]{0}', space=vmem, size = 0x1000, scoped, tag = 'input window, operand 0, single buffered']
    #allocation3 [shape = 's32[1]{0}', space=sflag, size = 0x4, scoped, tag = 'scoped memory for tpu_custom_call.1']
    #allocation4 [shape = 's32[1]{0}', space=sflag, size = 0x4, scoped, tag = 'scoped memory for tpu_custom_call.1']
    #allocation5 [shape = 'u8[8192]{0}', space=vmem, size = 0x2000, scoped, tag = 'input window, operand 1, single buffered']
    #allocation6 [shape = 's32[1]{0}', space=sflag, size = 0x4, scoped, tag = 'scoped memory for tpu_custom_call.1']
    #allocation7 [shape = 'u8[4096]{0}', space=vmem, size = 0x1000, scoped, tag = 'output window, operand 0, single buffered']
    %7 = vsyncpa [#allocation3], 0
    %8 = vsyncpa [#allocation6], 0
    %9 = vsyncpa [#allocation4], 0
    // Predicated region
    $region2: #{tpu_custom_call.1} parent=1 // pred_check
      _
    $region3: #{tpu_custom_call.1} parent=1 // pred_check_branch
      %11 = sbr.rel (0) target = $region5
    $region4: #{tpu_custom_call.1} parent=1 // pred_region
      %s13 = ssub.s32 128, 128
      %14 = vsyncadd [#allocation3], %s13
      %s16 = sshll.u32 [#allocation2], 4
      %s17 = int_to_ptr.vmem [resolvable:$true] %s16
      %19 = dma.hbm_to_vmem [thread:$0]  %s0, 128, %s17, [#allocation3]
    $region5: #{tpu_custom_call.1} parent=1 // pred_fallthru
      _
    // Predicated region
    $region6: #{tpu_custom_call.1} parent=1 // pred_check
      _
    $region7: #{tpu_custom_call.1} parent=1 // pred_check_branch
      %21 = sbr.rel (0) target = $region9
    $region8: #{tpu_custom_call.1} parent=1 // pred_region
      %s23 = ssub.s32 256, 256
      %24 = vsyncadd [#allocation6], %s23
      %s25 = sshll.u32 [#allocation5], 4
      %s26 = int_to_ptr.vmem [resolvable:$true] %s25
      %31 = dma.hbm_to_vmem [thread:$0]  %s1, 256, %s26, [#allocation6], 128, 128, 8
    $region9: #{tpu_custom_call.1} parent=1 // pred_fallthru
      _
    // Predicated region
    $region10: #{tpu_custom_call.1} parent=1 // pred_check
      _
    $region11: #{tpu_custom_call.1} parent=1 // pred_check_branch
      %33 = sbr.rel (0) target = $region13
    $region12: #{tpu_custom_call.1} parent=1 // pred_region
      %34 = dma.done [#allocation3], 128
    $region13: #{tpu_custom_call.1} parent=1 // pred_fallthru
      _
    // Predicated region
    $region14: #{tpu_custom_call.1} parent=1 // pred_check
      _
    $region15: #{tpu_custom_call.1} parent=1 // pred_check_branch
      %36 = sbr.rel (0) target = $region17
    $region16: #{tpu_custom_call.1} parent=1 // pred_region
      %37 = dma.done [#allocation6], 256
    $region17: #{tpu_custom_call.1} parent=1 // pred_fallthru
      _
    %v38 = vld [vmem:[#allocation2] sm:$0xff]
    %v39 = vld [vmem:[#allocation5] sm:$0xff]
    %v40 = vld [vmem:[#allocation5 + $0x8] sm:$0xff]
    %vm41 = vcmask 261120
    %v43 = vsel %vm41, %v38, 0
    %v46 = vsel %vm41, %v39, 0
    %v49 = vsel %vm41, %v40, 0
    %51 = vmatprep.subr.mxu0 0.0
    %52 = vmatpush1.xpose.msra.mxu0 %v46
    %53 = vmatprep.subr.mxu0 0.0
    %54 = vmatpush1.xpose.msra.mxu0 %v49
    %55 = vmatprep.subr.mxu0 0.0
    %56 = vmatpush1.xpose.msra.mxu0 0.0
    %57 = vmatprep.subr.mxu0 0.0
    %58 = vmatpush1.xpose.msra.mxu0 0.0
    %59 = vmatprep.subr.mxu0 0.0
    %60 = vmatpush1.xpose.msra.mxu0 0.0
    %61 = vmatprep.subr.mxu0 0.0
    %62 = vmatpush1.xpose.msra.mxu0 0.0
    %63 = vmatprep.subr.mxu0 0.0
    %64 = vmatpush1.xpose.msra.mxu0 0.0
    %65 = vmatprep.subr.mxu0 0.0
    %66 = vmatpush1.xpose.msra.mxu0 0.0
    %67 = vmatprep.subr.mxu0 0.0
    %68 = vmatpush1.xpose.msra.mxu0 0.0
    %69 = vmatprep.subr.mxu0 0.0
    %70 = vmatpush1.xpose.msra.mxu0 0.0
    %71 = vmatprep.subr.mxu0 0.0
    %72 = vmatpush1.xpose.msra.mxu0 0.0
    %73 = vmatprep.subr.mxu0 0.0
    %74 = vmatpush1.xpose.msra.mxu0 0.0
    %75 = vmatprep.subr.mxu0 0.0
    %76 = vmatpush1.xpose.msra.mxu0 0.0
    %77 = vmatprep.subr.mxu0 0.0
    %78 = vmatpush1.xpose.msra.mxu0 0.0
    %79 = vmatprep.subr.mxu0 0.0
    %80 = vmatpush1.xpose.msra.mxu0 0.0
    %81 = vmatprep.subr.mxu0 0.0
    %82 = vmatpush1.xpose.msra.mxu0 0.0
    %83 = vmatprep.subr.mxu0 0.0
    %84 = vmatpush1.xpose.msra.mxu0 0.0
    %85 = vmatprep.subr.mxu0 0.0
    %86 = vmatpush1.xpose.msra.mxu0 0.0
    %87 = vmatprep.subr.mxu0 0.0
    %88 = vmatpush1.xpose.msra.mxu0 0.0
    %89 = vmatprep.subr.mxu0 0.0
    %90 = vmatpush1.xpose.msra.mxu0 0.0
    %91 = vmatprep.subr.mxu0 0.0
    %92 = vmatpush1.xpose.msra.mxu0 0.0
    %93 = vmatprep.subr.mxu0 0.0
    %94 = vmatpush1.xpose.msra.mxu0 0.0
    %95 = vmatprep.subr.mxu0 0.0
    %96 = vmatpush1.xpose.msra.mxu0 0.0
    %97 = vmatprep.subr.mxu0 0.0
    %98 = vmatpush1.xpose.msra.mxu0 0.0
    %99 = vmatprep.subr.mxu0 0.0
    %100 = vmatpush1.xpose.msra.mxu0 0.0
    %101 = vmatprep.subr.mxu0 0.0
    %102 = vmatpush1.xpose.msra.mxu0 0.0
    %103 = vmatprep.subr.mxu0 0.0
    %104 = vmatpush1.xpose.msra.mxu0 0.0
    %105 = vmatprep.subr.mxu0 0.0
    %106 = vmatpush1.xpose.msra.mxu0 0.0
    %107 = vmatprep.subr.mxu0 0.0
    %108 = vmatpush1.xpose.msra.mxu0 0.0
    %109 = vmatprep.subr.mxu0 0.0
    %110 = vmatpush1.xpose.msra.mxu0 0.0
    %111 = vmatprep.subr.mxu0 0.0
    %112 = vmatpush1.xpose.msra.mxu0 0.0
    %113 = vmatprep.subr.mxu0 0.0
    %114 = vmatpush1.xpose.msra.mxu0 0.0
    %115 = vmatprep.mubr.f32.mxu0 0.0
    %116 = vmatmul.mubr.f32.gmra.mrb[0].mxu0 %v43
    %v117 = vpop.f32.mrb[0].mxu0
    %v118 = vadd.f32 0.0, %v117
    %v119 = vpop.f32.mrb[0].mxu0
    %120 = vdwg.mxu0
    %vm121 = vcmask 130048
    %122 = vst.msk [vmem:[#allocation7] sm:$0xff] %vm121, %v118
    // Predicated region
    $region18: #{tpu_custom_call.1} parent=1 // pred_check
      _
    $region19: #{tpu_custom_call.1} parent=1 // pred_check_branch
      %124 = sbr.rel (0) target = $region21
    $region20: #{tpu_custom_call.1} parent=1 // pred_region
      %s126 = ssub.s32 128, 128
      %127 = vsyncadd [#allocation4], %s126
      %s129 = sshll.u32 [#allocation7], 4
      %s130 = int_to_ptr.vmem [resolvable:$true] %s129
      %132 = dma.vmem_to_hbm [thread:$0]  %s130, 128, %s2, [#allocation4]
    $region21: #{tpu_custom_call.1} parent=1 // pred_fallthru
      _
    // Predicated region
    $region22: #{tpu_custom_call.1} parent=1 // pred_check
      _
    $region23: #{tpu_custom_call.1} parent=1 // pred_check_branch
      %134 = sbr.rel (0) target = $region25
    $region24: #{tpu_custom_call.1} parent=1 // pred_region
      %135 = dma.done [#allocation4], 128
    $region25: #{tpu_custom_call.1} parent=1 // pred_fallthru
      _
    %136 = vsyncpa [#allocation3], 1
    %137 = vsyncpa [#allocation6], 1
    %138 = vsyncpa [#allocation4], 1

</llo_original>
